<compile_context>
chip_gen: v5e
topology: v5e:2x2
jax: 0.10.0
libtpu: 0.0.40
codegen_flags: <defaults>
</compile_context>

<pallas_src>
import jax
import jax.numpy as jnp
from jax.experimental import pallas as pl
from jax.experimental.pallas import tpu as pltpu


def _round_up(n, m):
    return ((n + m - 1) // m) * m


def _vmem_capacity_bytes():
    try:
        return int(pltpu.get_tpu_info().vmem_capacity_bytes)
    except Exception:
        return 64 << 20  # conservative fallback (v7x per-TC VMEM)


def _caption_mlp_kernel(drop_ref, x_ref, u_ref, w1_ref, w2_ref, o_ref):
    """Fused token_drop + fc1 -> gelu(tanh) -> fc2 for one (batch, token-tile)."""
    b = pl.program_id(0)
    # Per-batch CFG drop flag (SMEM scalar) -> exact select against uncond rows.
    flag = jnp.full(x_ref.shape, drop_ref[b], dtype=jnp.int32)
    x = jnp.where(flag > 0, u_ref[...], x_ref[...])

    # fc1 on the MXU with native (bf16) operands, f32 accumulation.
    h = jnp.dot(x, w1_ref[...], preferred_element_type=jnp.float32)

    # GELU(approximate='tanh') in f32 (matches torch.nn.GELU(approximate='tanh')).
    c0 = 0.7978845608028654  # sqrt(2 / pi)
    h = 0.5 * h * (1.0 + jnp.tanh(c0 * (h + 0.044715 * (h * h * h))))

    # fc2: cast the activation back to the weight dtype for full MXU rate.
    y = jnp.dot(h.astype(w2_ref.dtype), w2_ref[...],
                preferred_element_type=jnp.float32)
    o_ref[...] = y.astype(o_ref.dtype)


class CaptionEmbedderPallas:
    """Pallas-TPU CaptionEmbedder.forward.

    w1: (in_channels, hidden_size)   == torch fc1.weight.T
    w2: (hidden_size, hidden_size)   == torch fc2.weight.T
    uncond_embedding: (token_num, in_channels)
    Weight padding / casting is done once here (hoisted out of the hot path).
    """

    def __init__(self, w1, w2, uncond_embedding, uncond_prob, *,
                 compute_dtype=jnp.bfloat16, out_dtype=None, token_tile=None):
        in_dim, hid_dim = w1.shape
        hid2, out_dim = w2.shape
        assert hid2 == hid_dim, (w1.shape, w2.shape)
        token_num, in2 = uncond_embedding.shape
        assert in2 == in_dim, (uncond_embedding.shape, w1.shape)

        self.uncond_prob = float(uncond_prob)
        self.in_dim, self.hid_dim, self.out_dim = in_dim, hid_dim, out_dim
        self.token_num = token_num
        self.compute_dtype = jnp.dtype(compute_dtype)
        self.out_dtype = (jnp.dtype(out_dtype) if out_dtype is not None
                          else self.compute_dtype)

        # Lane-dense feature axes (multiples of 128). Zero padding is exact:
        # gelu(0)=0 and zero weight rows/cols contribute nothing.
        in_p = _round_up(in_dim, 128)
        hid_p = _round_up(hid_dim, 128)
        out_p = _round_up(out_dim, 128)
        self.in_p, self.hid_p, self.out_p = in_p, hid_p, out_p

        x_bytes = self.compute_dtype.itemsize
        w_bytes = self.compute_dtype.itemsize
        o_bytes = self.out_dtype.itemsize
        weight_bytes = (in_p * hid_p + hid_p * out_p) * w_bytes
        vmem_cap = _vmem_capacity_bytes()

        if token_tile is None:
            token_tile = self._pick_token_tile(
                token_num, in_p, hid_p, out_p, x_bytes, o_bytes,
                weight_bytes, vmem_cap)
        self.token_tile = int(token_tile)
        self.tok_p = _round_up(token_num, self.token_tile)

        # Per-step VMEM: double-buffered x/uncond/out blocks plus the in-kernel
        # f32 temporaries (selected x, f32 h + gelu temps, cast h, f32 y).
        per_step = self.token_tile * (
            2 * (2 * in_p * x_bytes + out_p * o_bytes)
            + in_p * x_bytes
            + 3 * hid_p * 4 + hid_p * w_bytes
            + out_p * 4)
        self.vmem_limit = int(
            min(max(weight_bytes + per_step + (8 << 20), 32 << 20),
                int(vmem_cap * 0.75)))

        # One-time weight / uncond pad + cast (never paid per forward).
        self.w1p = jnp.pad(jnp.asarray(w1, self.compute_dtype),
                           ((0, in_p - in_dim), (0, hid_p - hid_dim)))
        self.w2p = jnp.pad(jnp.asarray(w2, self.compute_dtype),
                           ((0, hid_p - hid_dim), (0, out_p - out_dim)))
        self.uncond_p = jnp.pad(jnp.asarray(uncond_embedding, self.compute_dtype),
                                ((0, self.tok_p - token_num), (0, in_p - in_dim)))

    @staticmethod
    def _pick_token_tile(token_num, in_p, hid_p, out_p, x_bytes, o_bytes,
                         weight_bytes, vmem_cap):
        # No "minimum grid steps" cap: single-TC chips (v5e/v6e) want the biggest
        # M the VMEM budget allows, and the batch grid axis already provides
        # parallel steps for the 2-TC generation (v7x).
        budget = max(int(vmem_cap * 0.55) - weight_bytes, 4 << 20)
        per_row = (2 * (2 * in_p * x_bytes + out_p * o_bytes)
                   + in_p * x_bytes
                   + 3 * hid_p * 4 + hid_p * x_bytes
                   + out_p * 4)
        tile = int(budget // per_row) // 8 * 8
        tok8 = _round_up(token_num, 8)
        tile = max(8, min(tile, tok8, 2048))
        if tile >= tok8:
            return tok8  # whole (8-padded) token axis in a single tile
        # Balance the tiles so the last one isn't mostly padding.
        n_tiles = pl.cdiv(tok8, tile)
        return _round_up(pl.cdiv(tok8, n_tiles), 8)

    def __call__(self, caption, train, force_drop_ids=None, rng_key=None):
        batch, token_num, in_dim = caption.shape
        assert token_num == self.token_num and in_dim == self.in_dim

        use_dropout = self.uncond_prob > 0
        if (train and use_dropout) or (force_drop_ids is not None):
            if force_drop_ids is None:
                drop_ids = (jax.random.uniform(rng_key, (batch,))
                            < self.uncond_prob).astype(jnp.int32)
            else:
                drop_ids = (force_drop_ids == 1).astype(jnp.int32)
        else:
            drop_ids = jnp.zeros((batch,), jnp.int32)

        x = caption.astype(self.compute_dtype)
        pad_t = self.tok_p - token_num
        pad_f = self.in_p - in_dim
        if pad_t or pad_f:
            x = jnp.pad(x, ((0, 0), (0, pad_t), (0, pad_f)))

        grid = (batch, self.tok_p // self.token_tile)
        out = pl.pallas_call(
            _caption_mlp_kernel,
            out_shape=jax.ShapeDtypeStruct((batch, self.tok_p, self.out_p),
                                           self.out_dtype),
            grid_spec=pltpu.PrefetchScalarGridSpec(
                num_scalar_prefetch=1,   # drop_ids -> SMEM
                grid=grid,
                in_specs=[
                    # caption: (batch squeezed, token tile, padded features)
                    pl.BlockSpec((None, self.token_tile, self.in_p),
                                 lambda b, t, drop: (b, t, 0)),
                    # uncond_embedding: same token tile, batch-invariant
                    pl.BlockSpec((self.token_tile, self.in_p),
                                 lambda b, t, drop: (t, 0)),
                    # weights: grid-invariant, VMEM-resident (no per-step DMA)
                    pl.BlockSpec(memory_space=pltpu.MemorySpace.VMEM),
                    pl.BlockSpec(memory_space=pltpu.MemorySpace.VMEM),
                ],
                out_specs=pl.BlockSpec((None, self.token_tile, self.out_p),
                                       lambda b, t, drop: (b, t, 0)),
            ),
            compiler_params=pltpu.CompilerParams(
                dimension_semantics=("parallel", "parallel"),
                vmem_limit_bytes=self.vmem_limit,
            ),
        )(drop_ids, x, self.uncond_p, self.w1p, self.w2p)

        return out[:, :token_num, :self.out_dim]


def caption_embedder_ref(caption, w1, w2, uncond_embedding, force_drop_ids,
                         compute_dtype=jnp.bfloat16, out_dtype=jnp.bfloat16):
    """Pure-JAX reference replicating the kernel's cast points exactly."""
    drop = (force_drop_ids == 1)
    cap = jnp.where(drop[:, None, None], uncond_embedding[None, :, :], caption)
    x = cap.astype(compute_dtype).astype(jnp.float32)
    w1f = w1.astype(compute_dtype).astype(jnp.float32)
    w2f = w2.astype(compute_dtype).astype(jnp.float32)
    h = jnp.einsum("bti,ih->bth", x, w1f, precision=jax.lax.Precision.HIGHEST)
    c0 = 0.7978845608028654
    h = 0.5 * h * (1.0 + jnp.tanh(c0 * (h + 0.044715 * (h * h * h))))
    h = h.astype(compute_dtype).astype(jnp.float32)
    y = jnp.einsum("bth,ho->bto", h, w2f, precision=jax.lax.Precision.HIGHEST)
    return y.astype(out_dtype)


if __name__ == "__main__":
    key = jax.random.PRNGKey(0)
    k1, k2, k3, k4 = jax.random.split(key, 4)

    # Small shapes consistent with the module.
    batch, token_num, in_channels, hidden_size = 2, 120, 128, 256
    uncond_prob = 0.1

    caption = jax.random.normal(k1, (batch, token_num, in_channels), jnp.float32)
    # torch nn.Linear stores weight as (out, in); we pass the (in, out) transposes.
    w1 = jax.random.normal(k2, (in_channels, hidden_size), jnp.float32) * in_channels ** -0.5
    w2 = jax.random.normal(k3, (hidden_size, hidden_size), jnp.float32) * hidden_size ** -0.5
    uncond_embedding = (jax.random.normal(k4, (token_num, in_channels), jnp.float32)
                        * in_channels ** -0.5)

    embedder = CaptionEmbedderPallas(w1, w2, uncond_embedding, uncond_prob,
                                     compute_dtype=jnp.bfloat16,
                                     out_dtype=jnp.bfloat16)

    # Deterministic CFG drop pattern (exercises fused token_drop): drop batch 0.
    force_drop_ids = jnp.array([1, 0], dtype=jnp.int32)

    out = embedder(caption, train=False, force_drop_ids=force_drop_ids)
    out = jax.block_until_ready(out)

    ref = caption_embedder_ref(caption, w1, w2, uncond_embedding, force_drop_ids)
    assert out.shape == (batch, token_num, hidden_size), out.shape
    out32 = out.astype(jnp.float32)
    ref32 = ref.astype(jnp.float32)
    max_diff = float(jnp.max(jnp.abs(out32 - ref32)))
    assert jnp.allclose(out32, ref32, atol=1e-2, rtol=1e-2), \
        f"mismatch vs reference, max abs diff={max_diff}"
    print("KERNEL_OK")
</pallas_src>

<mosaic_0001>
module attributes {stable_mosaic.version = 11 : i64} {
  func.func @_caption_mlp_kernel(%arg0: i32, %arg1: i32, %arg2: memref<2xi32, #tpu.memory_space<smem>>, %arg3: memref<1x120x128xbf16, #tpu.memory_space<vmem>>, %arg4: memref<120x128xbf16, #tpu.memory_space<vmem>>, %arg5: memref<128x256xbf16, #tpu.memory_space<vmem>>, %arg6: memref<256x256xbf16, #tpu.memory_space<vmem>>, %arg7: memref<1x120x256xbf16, #tpu.memory_space<vmem>>) attributes {dimension_semantics = [#tpu.dimension_semantics<parallel>, #tpu.dimension_semantics<parallel>], iteration_bounds = array<i64: 2, 1>, scalar_prefetch = 1 : i64, scratch_operands = 0 : i64, tpu.core_type = #tpu.core_type<tc>, window_params = [{transform_indices = @transform_0, window_bounds = array<i64: 1, 120, 128>}, {transform_indices = @transform_1, window_bounds = array<i64: 120, 128>}, {pipeline_mode = #tpu.pipeline_mode<synchronous>, transform_indices = @transform_2, window_bounds = array<i64: 128, 256>}, {pipeline_mode = #tpu.pipeline_mode<synchronous>, transform_indices = @transform_3, window_bounds = array<i64: 256, 256>}, {transform_indices = @transform_4, window_bounds = array<i64: 1, 120, 256>}]} {
    %0 = arith.index_cast %arg0 : i32 to index
    %1 = memref.load %arg2[%0] : memref<2xi32, #tpu.memory_space<smem>>
    %2 = vector.broadcast %1 : i32 to vector<120x128xi32>
    %c0_i32 = arith.constant 0 : i32
    %3 = vector.broadcast %c0_i32 : i32 to vector<120x128xi32>
    %4 = arith.cmpi sgt, %2, %3 : vector<120x128xi32>
    %c0 = arith.constant 0 : index
    %c0_0 = arith.constant 0 : index
    %5 = vector.load %arg4[%c0, %c0_0] : memref<120x128xbf16, #tpu.memory_space<vmem>>, vector<120x128xbf16>
    %c0_1 = arith.constant 0 : index
    %c0_2 = arith.constant 0 : index
    %c0_3 = arith.constant 0 : index
    %6 = vector.load %arg3[%c0_1, %c0_2, %c0_3] : memref<1x120x128xbf16, #tpu.memory_space<vmem>>, vector<1x120x128xbf16>
    %7 = vector.shape_cast %6 : vector<1x120x128xbf16> to vector<120x128xbf16>
    %8 = arith.select %4, %5, %7 : vector<120x128xi1>, vector<120x128xbf16>
    %c0_4 = arith.constant 0 : index
    %c0_5 = arith.constant 0 : index
    %9 = vector.load %arg5[%c0_4, %c0_5] : memref<128x256xbf16, #tpu.memory_space<vmem>>, vector<128x256xbf16>
    %cst = arith.constant dense<0.000000e+00> : vector<120x256xf32>
    %10 = tpu.matmul %8, %9, %cst {dimension_numbers = #tpu.dot_dimension_numbers<[1], [0], [0], [1], [0, 0, 1, 1], [], []>} : vector<120x128xbf16>, vector<128x256xbf16>, vector<120x256xf32> -> vector<120x256xf32>
    %cst_6 = arith.constant 5.000000e-01 : f32
    %11 = vector.broadcast %cst_6 : f32 to vector<120x256xf32>
    %12 = arith.mulf %11, %10 : vector<120x256xf32>
    %13 = arith.mulf %10, %10 : vector<120x256xf32>
    %14 = arith.mulf %13, %10 : vector<120x256xf32>
    %cst_7 = arith.constant 4.471500e-02 : f32
    %15 = vector.broadcast %cst_7 : f32 to vector<120x256xf32>
    %16 = arith.mulf %15, %14 : vector<120x256xf32>
    %17 = arith.addf %10, %16 : vector<120x256xf32>
    %cst_8 = arith.constant 0.797884583 : f32
    %18 = vector.broadcast %cst_8 : f32 to vector<120x256xf32>
    %19 = arith.mulf %18, %17 : vector<120x256xf32>
    %20 = math.tanh %19 : vector<120x256xf32>
    %cst_9 = arith.constant 1.000000e+00 : f32
    %21 = vector.broadcast %cst_9 : f32 to vector<120x256xf32>
    %22 = arith.addf %21, %20 : vector<120x256xf32>
    %23 = arith.mulf %12, %22 : vector<120x256xf32>
    %24 = arith.truncf %23 : vector<120x256xf32> to vector<120x256xbf16>
    %c0_10 = arith.constant 0 : index
    %c0_11 = arith.constant 0 : index
    %25 = vector.load %arg6[%c0_10, %c0_11] : memref<256x256xbf16, #tpu.memory_space<vmem>>, vector<256x256xbf16>
    %cst_12 = arith.constant dense<0.000000e+00> : vector<120x256xf32>
    %26 = tpu.matmul %24, %25, %cst_12 {dimension_numbers = #tpu.dot_dimension_numbers<[1], [0], [0], [1], [0, 0, 1, 1], [], []>} : vector<120x256xbf16>, vector<256x256xbf16>, vector<120x256xf32> -> vector<120x256xf32>
    %27 = arith.truncf %26 : vector<120x256xf32> to vector<120x256xbf16>
    %c0_13 = arith.constant 0 : index
    %c0_14 = arith.constant 0 : index
    %c0_15 = arith.constant 0 : index
    %28 = vector.load %arg7[%c0_13, %c0_14, %c0_15] : memref<1x120x256xbf16, #tpu.memory_space<vmem>>, vector<1x120x256xbf16>
    %29 = vector.shape_cast %28 : vector<1x120x256xbf16> to vector<120x256xbf16>
    %30 = vector.shape_cast %27 : vector<120x256xbf16> to vector<1x120x256xbf16>
    tpu.vector_store %arg7[%c0_13, %c0_14, %c0_15], %30 {strides = array<i32>} : memref<1x120x256xbf16, #tpu.memory_space<vmem>>, vector<1x120x256xbf16>,
    return
  }
  func.func @transform_0(%arg0: i32, %arg1: i32, %arg2: memref<2xi32, #tpu.memory_space<smem>>) -> (i32, i32, i32) {
    %c0_i32 = arith.constant 0 : i32
    %c0_i32_0 = arith.constant 0 : i32
    return %arg0, %arg1, %c0_i32 : i32, i32, i32
  }
  func.func @transform_1(%arg0: i32, %arg1: i32, %arg2: memref<2xi32, #tpu.memory_space<smem>>) -> (i32, i32) {
    %c0_i32 = arith.constant 0 : i32
    %c0_i32_0 = arith.constant 0 : i32
    return %arg1, %c0_i32 : i32, i32
  }
  func.func @transform_2(%arg0: i32, %arg1: i32, %arg2: memref<2xi32, #tpu.memory_space<smem>>) -> (i32, i32) {
    %c0_i32 = arith.constant 0 : i32
    %c0_i32_0 = arith.constant 0 : i32
    %c0_i32_1 = arith.constant 0 : i32
    return %c0_i32, %c0_i32_0 : i32, i32
  }
  func.func @transform_3(%arg0: i32, %arg1: i32, %arg2: memref<2xi32, #tpu.memory_space<smem>>) -> (i32, i32) {
    %c0_i32 = arith.constant 0 : i32
    %c0_i32_0 = arith.constant 0 : i32
    %c0_i32_1 = arith.constant 0 : i32
    return %c0_i32, %c0_i32_0 : i32, i32
  }
  func.func @transform_4(%arg0: i32, %arg1: i32, %arg2: memref<2xi32, #tpu.memory_space<smem>>) -> (i32, i32, i32) {
    %c0_i32 = arith.constant 0 : i32
    %c0_i32_0 = arith.constant 0 : i32
    return %arg0, %arg1, %c0_i32 : i32, i32, i32
  }
}

</mosaic_0001>

<llo_original>
// kernel: tpu_custom_call.1
$region0: #{tpu_custom_call.1}
  #allocation0 [shape = 'u32[]', space=smem, size = 0x4, offset = 0x4, fixed_abs, tag = 'smem constant byte address 0x4 - core index']
  #allocation1 [shape = 'u32[72,128]{1,0:T(1,128)}', space=vmem, size = 0x9000, scoped, tag = 'internal scratch']
  #allocation2 [shape = 's32[1]{0}', space=sflag, size = 0x4, scoped, tag = 'scoped memory for tpu_custom_call.1']
  #allocation3 [shape = 'u8[512]{0}', space=smem, size = 0x200, scoped, tag = 'prefetched SMEM operand 0']
  %s0 = inlined_call_operand.hbm [shape: s32[2], index: 0, kind: input, shape index: {}]
  %s1 = inlined_call_operand.hbm [shape: bf16[2,120,128], index: 1, kind: input, shape index: {}]
  %s2 = inlined_call_operand.hbm [shape: bf16[120,128], index: 2, kind: input, shape index: {}]
  %s3 = inlined_call_operand.hbm [shape: bf16[128,256], index: 3, kind: input, shape index: {}]
  %s4 = inlined_call_operand.hbm [shape: bf16[256,256], index: 4, kind: input, shape index: {}]
  %s5 = inlined_call_operand.hbm [shape: bf16[2,120,256], index: 5, kind: output, shape index: {}]
  %s6 = sld [smem:[#allocation0]]
  $region65: #{tpu_custom_call.1} parent=0
    _
  %s8 = ssub.s32 1, %s6
  %s9 = scalar_select 0, %s8, %s6
  %s11 = sshll.u32 %s0, 4
  %s12 = int_to_ptr.hbm [resolvable:$true] %s11
  %14 = dma.hbm_to_smem %s12, 16, [#allocation3], [#allocation2]
  %16 = dma.done [#allocation2], 16
  %17 = sfence
  $region1: #{tpu_custom_call.1} parent=0
    #allocation4 [shape = 'u8[61440]{0}', space=vmem, size = 0xf000, scoped, tag = 'input window, operand 1']
    #allocation5 [shape = 's32[2]{0}', space=sflag, size = 0x8, scoped, tag = 'scoped memory for tpu_custom_call.1']
    #allocation6 [shape = 's32[2]{0}', space=sflag, size = 0x8, scoped, tag = 'scoped memory for tpu_custom_call.1']
    #allocation7 [shape = 'u8[30720]{0}', space=vmem, size = 0x7800, scoped, tag = 'input window, operand 2, single buffered']
    #allocation8 [shape = 's32[1]{0}', space=sflag, size = 0x4, scoped, tag = 'scoped memory for tpu_custom_call.1']
    #allocation9 [shape = 'u8[65536]{0}', space=vmem, size = 0x10000, scoped, tag = 'input window, operand 3, single buffered']
    #allocation10 [shape = 'u8[131072]{0}', space=vmem, size = 0x20000, scoped, tag = 'input window, operand 4, single buffered']
    #allocation11 [shape = 's32[1]{0}', space=sflag, size = 0x4, scoped, tag = 'scoped memory for tpu_custom_call.1']
    #allocation12 [shape = 'u8[122880]{0}', space=vmem, size = 0x1e000, scoped, tag = 'output window, operand 0']
    %18 = vsyncpa [#allocation5], 0
    %s19 = scalar_lea.sflag [#allocation5], 1
    %20 = vsyncpa %s19, 0
    %21 = vsyncpa [#allocation8], 0
    %22 = vsyncpa [#allocation11], 0
    %23 = vsyncpa [#allocation6], 0
    %s24 = scalar_lea.sflag [#allocation6], 1
    %25 = vsyncpa %s24, 0
    loop: start=0, step=1, limit=4
    $region2: #{tpu_custom_call.1} parent=1 // loop_pre_header
      _
    $region3: #{tpu_custom_call.1} parent=1 // loop_header
      %s27 = sphi 0, %s31
      %p28 = scmp.ge.s32.totalorder %s27, 4
      %s34 = sphi 0, %s46
      %s35 = sphi 0, %s42
      %s36 = sphi 0, %s34
      %s37 = sphi 0, %s35
      %s38 = sphi 0, %s36
      %s39 = sphi 0, %s37
      %s51 = sphi 0, %s53
      %s54 = sphi 0, %s51
      %s55 = sphi 0, %s54
      %s71 = sphi 0, %s55
      %s77 = sphi 0, %s79
      %s80 = sphi 0, %s77
      %s81 = sphi 0, %s80
      %s97 = sphi 0, %s81
      %s101 = sphi 0, %s101
      %s103 = sphi 0, %s101
      %s104 = sphi 0, %s103
      %s118 = sphi 0, %s104
      %s122 = sphi 0, %s122
      %s124 = sphi 0, %s122
      %s125 = sphi 0, %s124
      %s139 = sphi 0, %s125
      %s147 = sphi 0, %s149
      %s150 = sphi 0, %s147
      %s151 = sphi 0, %s150
      %s167 = sphi 0, %s151
    $region4: #{tpu_custom_call.1} parent=1 // loop_header_branch
      %30 = sbr.rel (%p28) target = $region8
    $region5: #{tpu_custom_call.1} parent=1 // loop_body
      %s32 = ssub.s32 %s27, 1
      %s33 = ssub.s32 %s27, 2
      %s40 = sadd.s32 1, %s35
      %p41 = scmp.ge.s32.totalorder %s40, 1
      %s42 = scalar_select %p41, 0, %s40
      %s43 = sadd.s32 1, %s34
      %s44 = scalar_select %p41, %s43, %s34
      %p45 = scmp.ge.s32.totalorder %s44, 2
      %s46 = scalar_select %p45, 0, %s44
      %s47 = ssub.s32 %s34, %s46
      %s48 = ssub.s32 %s35, %s42
      %s49 = sor.u32 %s47, %s48
      %p50 = scmp.eq.s32.totalorder %s49, 0
      %s52 = sadd.s32 %s51, 1
      %s53 = scalar_select %p50, %s51, %s52
      %p56 = pneg %p50
      %p57 = scmp.eq.s32.totalorder %s27, 1
      %p58 = por %p56, %p57
      %p59 = scmp.ne.s32.totalorder %s51, %s54
      %p60 = scmp.eq.s32.totalorder %s27, 0
      %p61 = por %p59, %p60
      %p62 = scmp.ne.s32.totalorder %s51, %s54
      %p63 = scmp.eq.s32.totalorder %s32, 1
      %p64 = por %p62, %p63
      %p65 = scmp.ne.s32.totalorder %s54, %s55
      %p66 = scmp.eq.s32.totalorder %s32, 0
      %p67 = por %p65, %p66
      %p68 = scmp.ne.s32.totalorder %s54, %s55
      %p69 = scmp.eq.s32.totalorder %s33, 1
      %p70 = por %p68, %p69
      %p72 = scmp.ne.s32.totalorder %s55, %s71
      %p73 = scmp.eq.s32.totalorder %s33, 0
      %p74 = por %p72, %p73
      %s75 = ssub.s32 %s35, %s42
      %p76 = scmp.eq.s32.totalorder %s75, 0
      %s78 = sadd.s32 %s77, 1
      %s79 = scalar_select %p76, %s77, %s78
      %p82 = pneg %p76
      %p83 = scmp.eq.s32.totalorder %s27, 1
      %p84 = por %p82, %p83
      %p85 = scmp.ne.s32.totalorder %s77, %s80
      %p86 = scmp.eq.s32.totalorder %s27, 0
      %p87 = por %p85, %p86
      %p88 = scmp.ne.s32.totalorder %s77, %s80
      %p89 = scmp.eq.s32.totalorder %s32, 1
      %p90 = por %p88, %p89
      %p91 = scmp.ne.s32.totalorder %s80, %s81
      %p92 = scmp.eq.s32.totalorder %s32, 0
      %p93 = por %p91, %p92
      %p94 = scmp.ne.s32.totalorder %s80, %s81
      %p95 = scmp.eq.s32.totalorder %s33, 1
      %p96 = por %p94, %p95
      %p98 = scmp.ne.s32.totalorder %s81, %s97
      %p99 = scmp.eq.s32.totalorder %s33, 0
      %p100 = por %p98, %p99
      %s102 = sadd.s32 %s101, 1
      %p105 = scmp.eq.s32.totalorder %s27, 1
      %p106 = scmp.ne.s32.totalorder %s101, %s103
      %p107 = scmp.eq.s32.totalorder %s27, 0
      %p108 = por %p106, %p107
      %p109 = scmp.ne.s32.totalorder %s101, %s103
      %p110 = scmp.eq.s32.totalorder %s32, 1
      %p111 = por %p109, %p110
      %p112 = scmp.ne.s32.totalorder %s103, %s104
      %p113 = scmp.eq.s32.totalorder %s32, 0
      %p114 = por %p112, %p113
      %p115 = scmp.ne.s32.totalorder %s103, %s104
      %p116 = scmp.eq.s32.totalorder %s33, 1
      %p117 = por %p115, %p116
      %p119 = scmp.ne.s32.totalorder %s104, %s118
      %p120 = scmp.eq.s32.totalorder %s33, 0
      %p121 = por %p119, %p120
      %s123 = sadd.s32 %s122, 1
      %p126 = scmp.eq.s32.totalorder %s27, 1
      %p127 = scmp.ne.s32.totalorder %s122, %s124
      %p128 = scmp.eq.s32.totalorder %s27, 0
      %p129 = por %p127, %p128
      %p130 = scmp.ne.s32.totalorder %s122, %s124
      %p131 = scmp.eq.s32.totalorder %s32, 1
      %p132 = por %p130, %p131
      %p133 = scmp.ne.s32.totalorder %s124, %s125
      %p134 = scmp.eq.s32.totalorder %s32, 0
      %p135 = por %p133, %p134
      %p136 = scmp.ne.s32.totalorder %s124, %s125
      %p137 = scmp.eq.s32.totalorder %s33, 1
      %p138 = por %p136, %p137
      %p140 = scmp.ne.s32.totalorder %s125, %s139
      %p141 = scmp.eq.s32.totalorder %s33, 0
      %p142 = por %p140, %p141
      %s143 = ssub.s32 %s34, %s46
      %s144 = ssub.s32 %s35, %s42
      %s145 = sor.u32 %s143, %s144
      %p146 = scmp.eq.s32.totalorder %s145, 0
      %s148 = sadd.s32 %s147, 1
      %s149 = scalar_select %p146, %s147, %s148
      %p152 = pneg %p146
      %p153 = scmp.eq.s32.totalorder %s27, 1
      %p154 = por %p152, %p153
      %p155 = scmp.ne.s32.totalorder %s147, %s150
      %p156 = scmp.eq.s32.totalorder %s27, 0
      %p157 = por %p155, %p156
      %p158 = scmp.ne.s32.totalorder %s147, %s150
      %p159 = scmp.eq.s32.totalorder %s32, 1
      %p160 = por %p158, %p159
      %p161 = scmp.ne.s32.totalorder %s150, %s151
      %p162 = scmp.eq.s32.totalorder %s32, 0
      %p163 = por %p161, %p162
      %p164 = scmp.ne.s32.totalorder %s150, %s151
      %p165 = scmp.eq.s32.totalorder %s33, 1
      %p166 = por %p164, %p165
      %p168 = scmp.ne.s32.totalorder %s151, %s167
      %p169 = scmp.eq.s32.totalorder %s33, 0
      %p170 = por %p168, %p169
      %p171 = scmp.le.s32.totalorder 1, %s27
      %p172 = scmp.lt.s32.totalorder %s27, 3
      %p173 = pnand %p171, %p172
      %p174 = pneg %p173
      // Predicated region
      $region9: #{tpu_custom_call.1} parent=5 // pred_check
        _
      $region10: #{tpu_custom_call.1} parent=5 // pred_check_branch
        %176 = sbr.rel (%p173) target = $region12
      $region11: #{tpu_custom_call.1} parent=5 // pred_region
        %s177 = ssub.s32 %s27, 1
        // Predicated region
        $region13: #{tpu_custom_call.1} parent=11 // pred_check
          %p178 = pneg %p93
        $region14: #{tpu_custom_call.1} parent=11 // pred_check_branch
          %180 = sbr.rel (%p178) target = $region16
        $region15: #{tpu_custom_call.1} parent=11 // pred_region
          %s181 = smul.u32 15, %s37
          %183 = vsyncadd [#allocation8], 0
          %s184 = smul.addr %s181, 4
          %s185 = scalar_lea.hbm %s2, %s184
          %s186 = sshll.u32 %s185, 4
          %s187 = int_to_ptr.hbm [resolvable:$true] %s186
          %s188 = sshll.u32 [#allocation7], 4
          %s189 = int_to_ptr.vmem [resolvable:$true] %s188
          %194 = dma.hbm_to_vmem [thread:$0]  %s187, 960, %s189, [#allocation8], 64, 64, 4
        $region16: #{tpu_custom_call.1} parent=11 // pred_fallthru
          _
        // Predicated region
        $region17: #{tpu_custom_call.1} parent=11 // pred_check
          %p195 = pneg %p114
        $region18: #{tpu_custom_call.1} parent=11 // pred_check_branch
          %197 = sbr.rel (%p195) target = $region20
        $region19: #{tpu_custom_call.1} parent=11 // pred_region
          %199 = vsyncadd [#allocation8], 0
          %s200 = sshll.u32 %s3, 4
          %s201 = int_to_ptr.hbm [resolvable:$true] %s200
          %s202 = sshll.u32 [#allocation9], 4
          %s203 = int_to_ptr.vmem [resolvable:$true] %s202
          %208 = dma.hbm_to_vmem [thread:$0]  %s201, 2048, %s203, [#allocation8], 128, 128, 8
        $region20: #{tpu_custom_call.1} parent=11 // pred_fallthru
          _
        // Predicated region
        $region21: #{tpu_custom_call.1} parent=11 // pred_check
          %p209 = pneg %p135
        $region22: #{tpu_custom_call.1} parent=11 // pred_check_branch
          %211 = sbr.rel (%p209) target = $region24
        $region23: #{tpu_custom_call.1} parent=11 // pred_region
          %213 = vsyncadd [#allocation11], 0
          %s214 = sshll.u32 %s4, 4
          %s215 = int_to_ptr.hbm [resolvable:$true] %s214
          %s216 = sshll.u32 [#allocation10], 4
          %s217 = int_to_ptr.vmem [resolvable:$true] %s216
          %222 = dma.hbm_to_vmem [thread:$0]  %s215, 4096, %s217, [#allocation11], 128, 128, 8
        $region24: #{tpu_custom_call.1} parent=11 // pred_fallthru
          _
      $region12: #{tpu_custom_call.1} parent=5 // pred_fallthru
        _
      %p223 = scmp.lt.s32.totalorder %s27, 2
      // Predicated region
      $region25: #{tpu_custom_call.1} parent=5 // pred_check
        %p224 = pneg %p223
      $region26: #{tpu_custom_call.1} parent=5 // pred_check_branch
        %226 = sbr.rel (%p224) target = $region28
      $region27: #{tpu_custom_call.1} parent=5 // pred_region
        // Predicated region
        $region29: #{tpu_custom_call.1} parent=27 // pred_check
          %p227 = pneg %p61
        $region30: #{tpu_custom_call.1} parent=27 // pred_check_branch
          %229 = sbr.rel (%p227) target = $region32
        $region31: #{tpu_custom_call.1} parent=27 // pred_region
          %s230 = sand.u32 %s51, 1
          %s231 = scalar_lea.sflag [#allocation5], %s230
          %s232 = sand.u32 %s51, 1
          %s233 = smul.addr %s232, 60
          %s234 = scalar_lea.vmem [#allocation4], %s233
          %s235 = smul.u32 15, %s35
          %237 = vsyncadd %s231, 0
          %s238 = smul.addr %s34, 15
          %s239 = sadd.s32 %s235, %s238
          %s240 = smul.addr %s239, 4
          %s241 = scalar_lea.hbm %s1, %s240
          %s242 = sshll.u32 %s241, 4
          %s243 = int_to_ptr.hbm [resolvable:$true] %s242
          %s244 = sshll.u32 %s234, 4
          %s245 = int_to_ptr.vmem [resolvable:$true] %s244
          %250 = dma.hbm_to_vmem [thread:$0]  %s243, 960, %s245, %s231, 64, 64, 4
        $region32: #{tpu_custom_call.1} parent=27 // pred_fallthru
          _
      $region28: #{tpu_custom_call.1} parent=5 // pred_fallthru
        _
      %p251 = scmp.le.s32.totalorder 1, %s27
      %p252 = scmp.lt.s32.totalorder %s27, 3
      %p253 = pnand %p251, %p252
      %p254 = pneg %p253
      // Predicated region
      $region33: #{tpu_custom_call.1} parent=5 // pred_check
        _
      $region34: #{tpu_custom_call.1} parent=5 // pred_check_branch
        %256 = sbr.rel (%p253) target = $region36
      $region35: #{tpu_custom_call.1} parent=5 // pred_region
        %s257 = ssub.s32 %s27, 1
        %s258 = sand.u32 %s54, 1
        %s259 = scalar_lea.sflag [#allocation5], %s258
        %s260 = sand.u32 %s54, 1
        %s261 = smul.addr %s260, 60
        %s262 = scalar_lea.vmem [#allocation4], %s261
        // Predicated region
        $region37: #{tpu_custom_call.1} parent=35 // pred_check
          %p263 = pneg %p67
        $region38: #{tpu_custom_call.1} parent=35 // pred_check_branch
          %265 = sbr.rel (%p263) target = $region40
        $region39: #{tpu_custom_call.1} parent=35 // pred_region
          %267 = dma.done %s259, 960
        $region40: #{tpu_custom_call.1} parent=35 // pred_fallthru
          _
        // Predicated region
        $region41: #{tpu_custom_call.1} parent=35 // pred_check
          %p268 = pneg %p93
        $region42: #{tpu_custom_call.1} parent=35 // pred_check_branch
          %270 = sbr.rel (%p268) target = $region44
        $region43: #{tpu_custom_call.1} parent=35 // pred_region
          %272 = dma.done [#allocation8], 960
        $region44: #{tpu_custom_call.1} parent=35 // pred_fallthru
          _
        // Predicated region
        $region45: #{tpu_custom_call.1} parent=35 // pred_check
          %p273 = pneg %p114
        $region46: #{tpu_custom_call.1} parent=35 // pred_check_branch
          %275 = sbr.rel (%p273) target = $region48
        $region47: #{tpu_custom_call.1} parent=35 // pred_region
          %277 = dma.done [#allocation8], 2048
        $region48: #{tpu_custom_call.1} parent=35 // pred_fallthru
          _
        // Predicated region
        $region49: #{tpu_custom_call.1} parent=35 // pred_check
          %p278 = pneg %p135
        $region50: #{tpu_custom_call.1} parent=35 // pred_check_branch
          %280 = sbr.rel (%p278) target = $region52
        $region51: #{tpu_custom_call.1} parent=35 // pred_region
          %282 = dma.done [#allocation11], 4096
        $region52: #{tpu_custom_call.1} parent=35 // pred_fallthru
          _
        %s283 = sand.u32 %s54, 1
        %s284 = scalar_lea.sflag [#allocation5], %s283
        %s285 = sand.u32 %s54, 1
        %s286 = smul.addr %s285, 60
        %s287 = scalar_lea.vmem [#allocation4], %s286
        %p288 = pneg %p67
        %p289 = pneg %p64
        %p290 = pneg %p93
        %p291 = pneg %p90
        %p292 = pneg %p114
        %p293 = pneg %p111
        %p294 = pneg %p135
        %p295 = pneg %p132
        %p296 = pneg %p163
        %p297 = pneg %p160
        %s298 = sand.u32 %s150, 1
        %s299 = scalar_lea.sflag [#allocation6], %s298
        %s300 = sand.u32 %s150, 1
        %s301 = smul.addr %s300, 120
        %s302 = scalar_lea.vmem [#allocation12], %s301
        %s303 = smul.u32 15, %s37
        %s304 = smul.u32 15, %s37
        %s305 = smul.u32 15, %s37
        %s306 = sld [smem:[#allocation3 + %s36]]
        %v307 = vstv %s306
        %vm308 = vcmp.gt.s32.totalorder %v307, 0
        %v309 = vld [vmem:[#allocation7] sm:$0xf]
        %v310 = vld [vmem:[#allocation7 + $0x4] sm:$0xf]
        %v311 = vld [vmem:[#allocation7 + $0x8] sm:$0xf]
        %v312 = vld [vmem:[#allocation7 + $0xc] sm:$0xf]
        %v313 = vld [vmem:[#allocation7 + $0x10] sm:$0xf]
        %v314 = vld [vmem:[#allocation7 + $0x14] sm:$0xf]
        %v315 = vld [vmem:[#allocation7 + $0x18] sm:$0xf]
        %v316 = vld [vmem:[#allocation7 + $0x1c] sm:$0xf]
        %v317 = vld [vmem:[#allocation7 + $0x20] sm:$0xf]
        %v318 = vld [vmem:[#allocation7 + $0x24] sm:$0xf]
        %v319 = vld [vmem:[#allocation7 + $0x28] sm:$0xf]
        %v320 = vld [vmem:[#allocation7 + $0x2c] sm:$0xf]
        %v321 = vld [vmem:[#allocation7 + $0x30] sm:$0xf]
        %v322 = vld [vmem:[#allocation7 + $0x34] sm:$0xf]
        %v323 = vld [vmem:[#allocation7 + $0x38] sm:$0xf]
        %v324 = vld [vmem:[%s262] sm:$0xf]
        %v325 = vld [vmem:[%s262 + $0x4] sm:$0xf]
        %v326 = vld [vmem:[%s262 + $0x8] sm:$0xf]
        %v327 = vld [vmem:[%s262 + $0xc] sm:$0xf]
        %v328 = vld [vmem:[%s262 + $0x10] sm:$0xf]
        %v329 = vld [vmem:[%s262 + $0x14] sm:$0xf]
        %v330 = vld [vmem:[%s262 + $0x18] sm:$0xf]
        %v331 = vld [vmem:[%s262 + $0x1c] sm:$0xf]
        %v332 = vld [vmem:[%s262 + $0x20] sm:$0xf]
        %v333 = vld [vmem:[%s262 + $0x24] sm:$0xf]
        %v334 = vld [vmem:[%s262 + $0x28] sm:$0xf]
        %v335 = vld [vmem:[%s262 + $0x2c] sm:$0xf]
        %v336 = vld [vmem:[%s262 + $0x30] sm:$0xf]
        %v337 = vld [vmem:[%s262 + $0x34] sm:$0xf]
        %v338 = vld [vmem:[%s262 + $0x38] sm:$0xf]
        %v339 = vsel %vm308, %v309, %v324
        %v340 = vsel %vm308, %v310, %v325
        %v341 = vsel %vm308, %v311, %v326
        %v342 = vsel %vm308, %v312, %v327
        %v343 = vsel %vm308, %v313, %v328
        %v344 = vsel %vm308, %v314, %v329
        %v345 = vsel %vm308, %v315, %v330
        %v346 = vsel %vm308, %v316, %v331
        %v347 = vsel %vm308, %v317, %v332
        %v348 = vsel %vm308, %v318, %v333
        %v349 = vsel %vm308, %v319, %v334
        %v350 = vsel %vm308, %v320, %v335
        %v351 = vsel %vm308, %v321, %v336
        %v352 = vsel %vm308, %v322, %v337
        %v353 = vsel %vm308, %v323, %v338
        %v354 = vld [vmem:[#allocation9] sm:$0xff]
        %v355 = vld [vmem:[#allocation9 + $0x8] sm:$0xff]
        %v356 = vld [vmem:[#allocation9 + $0x10] sm:$0xff]
        %v357 = vld [vmem:[#allocation9 + $0x18] sm:$0xff]
        %v358 = vld [vmem:[#allocation9 + $0x20] sm:$0xff]
        %v359 = vld [vmem:[#allocation9 + $0x28] sm:$0xff]
        %v360 = vld [vmem:[#allocation9 + $0x30] sm:$0xff]
        %v361 = vld [vmem:[#allocation9 + $0x38] sm:$0xff]
        %v362 = vld [vmem:[#allocation9 + $0x40] sm:$0xff]
        %v363 = vld [vmem:[#allocation9 + $0x48] sm:$0xff]
        %v364 = vld [vmem:[#allocation9 + $0x50] sm:$0xff]
        %v365 = vld [vmem:[#allocation9 + $0x58] sm:$0xff]
        %v366 = vld [vmem:[#allocation9 + $0x60] sm:$0xff]
        %v367 = vld [vmem:[#allocation9 + $0x68] sm:$0xff]
        %v368 = vld [vmem:[#allocation9 + $0x70] sm:$0xff]
        %v369 = vld [vmem:[#allocation9 + $0x78] sm:$0xff]
        %v385 = vunpack.c.l.b16 %v339
        %v386 = vunpack.c.l.b16 %v340
        %v387 = vunpack.c.l.b16 %v341
        %v388 = vunpack.c.l.b16 %v342
        %v389 = vunpack.c.l.b16 %v343
        %v390 = vunpack.c.l.b16 %v344
        %v391 = vunpack.c.l.b16 %v345
        %v392 = vunpack.c.l.b16 %v346
        %v393 = vunpack.c.l.b16 %v347
        %v394 = vunpack.c.l.b16 %v348
        %v395 = vunpack.c.l.b16 %v349
        %v396 = vunpack.c.l.b16 %v350
        %v397 = vunpack.c.l.b16 %v351
        %v398 = vunpack.c.l.b16 %v352
        %v399 = vunpack.c.l.b16 %v353
        %v400 = vpack.c.b16 %v386, %v385
        %v401 = vpack.c.b16 %v388, %v387
        %v402 = vpack.c.b16 %v390, %v389
        %v403 = vpack.c.b16 %v392, %v391
        %v404 = vpack.c.b16 %v394, %v393
        %v405 = vpack.c.b16 %v396, %v395
        %v406 = vpack.c.b16 %v398, %v397
        %v407 = vpack.c.b16 %v399, %v399
        %v432 = vunpack.c.l.b16 %v354
        %v433 = vunpack.c.h.b16 %v354
        %v434 = vunpack.c.l.b16 %v355
        %v435 = vunpack.c.h.b16 %v355
        %v436 = vunpack.c.l.b16 %v356
        %v437 = vunpack.c.h.b16 %v356
        %v438 = vunpack.c.l.b16 %v357
        %v439 = vunpack.c.h.b16 %v357
        %v440 = vunpack.c.l.b16 %v358
        %v441 = vunpack.c.h.b16 %v358
        %v442 = vunpack.c.l.b16 %v359
        %v443 = vunpack.c.h.b16 %v359
        %v444 = vunpack.c.l.b16 %v360
        %v445 = vunpack.c.h.b16 %v360
        %v446 = vunpack.c.l.b16 %v361
        %v447 = vunpack.c.h.b16 %v361
        %v448 = vunpack.c.l.b16 %v362
        %v449 = vunpack.c.h.b16 %v362
        %v450 = vunpack.c.l.b16 %v363
        %v451 = vunpack.c.h.b16 %v363
        %v452 = vunpack.c.l.b16 %v364
        %v453 = vunpack.c.h.b16 %v364
        %v454 = vunpack.c.l.b16 %v365
        %v455 = vunpack.c.h.b16 %v365
        %v456 = vunpack.c.l.b16 %v366
        %v457 = vunpack.c.h.b16 %v366
        %v458 = vunpack.c.l.b16 %v367
        %v459 = vunpack.c.h.b16 %v367
        %v460 = vunpack.c.l.b16 %v368
        %v461 = vunpack.c.h.b16 %v368
        %v462 = vunpack.c.l.b16 %v369
        %v463 = vunpack.c.h.b16 %v369
        %v464 = vpack.c.b16 %v434, %v432
        %v465 = vpack.c.b16 %v435, %v433
        %v466 = vpack.c.b16 %v438, %v436
        %v467 = vpack.c.b16 %v439, %v437
        %v468 = vpack.c.b16 %v442, %v440
        %v469 = vpack.c.b16 %v443, %v441
        %v470 = vpack.c.b16 %v446, %v444
        %v471 = vpack.c.b16 %v447, %v445
        %v472 = vpack.c.b16 %v450, %v448
        %v473 = vpack.c.b16 %v451, %v449
        %v474 = vpack.c.b16 %v454, %v452
        %v475 = vpack.c.b16 %v455, %v453
        %v476 = vpack.c.b16 %v458, %v456
        %v477 = vpack.c.b16 %v459, %v457
        %v478 = vpack.c.b16 %v462, %v460
        %v479 = vpack.c.b16 %v463, %v461
        %496 = vmatpush.bf16.msra.mxu0 %v478
        %497 = vmatpush.bf16.msra.mxu0 %v476
        %498 = vmatpush.bf16.msra.mxu0 %v474
        %499 = vmatpush.bf16.msra.mxu0 %v472
        %500 = vmatpush.bf16.msra.mxu0 %v470
        %501 = vmatpush.bf16.msra.mxu0 %v468
        %502 = vmatpush.bf16.msra.mxu0 %v466
        %503 = vmatpush.bf16.msra.mxu0 %v464
        %504 = vmatmul.bf16.gmra.mxu0 %v400
        %v505 = vpop.f32.mrf.mxu0
        %v506 = vadd.f32 0.0, %v505
        %v507 = vpop.f32.mrf.mxu0
        %v508 = vadd.f32 0.0, %v507
        %509 = vmatmul.bf16.gmra.mxu0 %v401
        %v510 = vpop.f32.mrf.mxu0
        %v511 = vadd.f32 0.0, %v510
        %v512 = vpop.f32.mrf.mxu0
        %v513 = vadd.f32 0.0, %v512
        %514 = vmatmul.bf16.gmra.mxu0 %v402
        %v515 = vpop.f32.mrf.mxu0
        %v516 = vadd.f32 0.0, %v515
        %v517 = vpop.f32.mrf.mxu0
        %v518 = vadd.f32 0.0, %v517
        %519 = vmatmul.bf16.gmra.mxu0 %v403
        %v520 = vpop.f32.mrf.mxu0
        %v521 = vadd.f32 0.0, %v520
        %v522 = vpop.f32.mrf.mxu0
        %v523 = vadd.f32 0.0, %v522
        %524 = vmatmul.bf16.gmra.mxu0 %v404
        %v525 = vpop.f32.mrf.mxu0
        %v526 = vadd.f32 0.0, %v525
        %v527 = vpop.f32.mrf.mxu0
        %v528 = vadd.f32 0.0, %v527
        %529 = vmatmul.bf16.gmra.mxu0 %v405
        %v530 = vpop.f32.mrf.mxu0
        %v531 = vadd.f32 0.0, %v530
        %v532 = vpop.f32.mrf.mxu0
        %v533 = vadd.f32 0.0, %v532
        %534 = vmatmul.bf16.gmra.mxu0 %v406
        %v535 = vpop.f32.mrf.mxu0
        %v536 = vadd.f32 0.0, %v535
        %v537 = vpop.f32.mrf.mxu0
        %v538 = vadd.f32 0.0, %v537
        %539 = vmatmul.bf16.gmra.mxu0 %v407
        %v540 = vpop.f32.mrf.mxu0
        %v541 = vadd.f32 0.0, %v540
        %v542 = vpop.f32.mrf.mxu0
        %543 = vdwg.mxu0
        %544 = vmatpush.bf16.msra.mxu0 %v479
        %545 = vmatpush.bf16.msra.mxu0 %v477
        %546 = vmatpush.bf16.msra.mxu0 %v475
        %547 = vmatpush.bf16.msra.mxu0 %v473
        %548 = vmatpush.bf16.msra.mxu0 %v471
        %549 = vmatpush.bf16.msra.mxu0 %v469
        %550 = vmatpush.bf16.msra.mxu0 %v467
        %551 = vmatpush.bf16.msra.mxu0 %v465
        %552 = vmatmul.bf16.gmra.mxu0 %v400
        %v553 = vpop.f32.mrf.mxu0
        %v554 = vadd.f32 0.0, %v553
        %v555 = vpop.f32.mrf.mxu0
        %v556 = vadd.f32 0.0, %v555
        %557 = vmatmul.bf16.gmra.mxu0 %v401
        %v558 = vpop.f32.mrf.mxu0
        %v559 = vadd.f32 0.0, %v558
        %v560 = vpop.f32.mrf.mxu0
        %v561 = vadd.f32 0.0, %v560
        %562 = vmatmul.bf16.gmra.mxu0 %v402
        %v563 = vpop.f32.mrf.mxu0
        %v564 = vadd.f32 0.0, %v563
        %v565 = vpop.f32.mrf.mxu0
        %v566 = vadd.f32 0.0, %v565
        %567 = vmatmul.bf16.gmra.mxu0 %v403
        %v568 = vpop.f32.mrf.mxu0
        %v569 = vadd.f32 0.0, %v568
        %v570 = vpop.f32.mrf.mxu0
        %v571 = vadd.f32 0.0, %v570
        %572 = vmatmul.bf16.gmra.mxu0 %v404
        %v573 = vpop.f32.mrf.mxu0
        %v574 = vadd.f32 0.0, %v573
        %v575 = vpop.f32.mrf.mxu0
        %v576 = vadd.f32 0.0, %v575
        %577 = vmatmul.bf16.gmra.mxu0 %v405
        %v578 = vpop.f32.mrf.mxu0
        %v579 = vadd.f32 0.0, %v578
        %v580 = vpop.f32.mrf.mxu0
        %v581 = vadd.f32 0.0, %v580
        %582 = vmatmul.bf16.gmra.mxu0 %v406
        %v583 = vpop.f32.mrf.mxu0
        %v584 = vadd.f32 0.0, %v583
        %v585 = vpop.f32.mrf.mxu0
        %v586 = vadd.f32 0.0, %v585
        %587 = vmatmul.bf16.gmra.mxu0 %v407
        %v588 = vpop.f32.mrf.mxu0
        %v589 = vadd.f32 0.0, %v588
        %v590 = vpop.f32.mrf.mxu0
        %591 = vdwg.mxu0
        %v592 = vmul.f32 %v506, 0.5
        %v593 = vmul.f32 %v554, 0.5
        %v594 = vmul.f32 %v508, 0.5
        %v595 = vmul.f32 %v556, 0.5
        %v596 = vmul.f32 %v511, 0.5
        %v597 = vmul.f32 %v559, 0.5
        %v598 = vmul.f32 %v513, 0.5
        %v599 = vmul.f32 %v561, 0.5
        %v600 = vmul.f32 %v516, 0.5
        %v601 = vmul.f32 %v564, 0.5
        %v602 = vmul.f32 %v518, 0.5
        %v603 = vmul.f32 %v566, 0.5
        %v604 = vmul.f32 %v521, 0.5
        %v605 = vmul.f32 %v569, 0.5
        %v606 = vmul.f32 %v523, 0.5
        %v607 = vmul.f32 %v571, 0.5
        %v608 = vmul.f32 %v526, 0.5
        %v609 = vmul.f32 %v574, 0.5
        %v610 = vmul.f32 %v528, 0.5
        %v611 = vmul.f32 %v576, 0.5
        %v612 = vmul.f32 %v531, 0.5
        %v613 = vmul.f32 %v579, 0.5
        %v614 = vmul.f32 %v533, 0.5
        %v615 = vmul.f32 %v581, 0.5
        %v616 = vmul.f32 %v536, 0.5
        %v617 = vmul.f32 %v584, 0.5
        %v618 = vmul.f32 %v538, 0.5
        %v619 = vmul.f32 %v586, 0.5
        %v620 = vmul.f32 %v541, 0.5
        %v621 = vmul.f32 %v589, 0.5
        %v622 = vmul.f32 %v506, %v506
        %v623 = vmul.f32 %v554, %v554
        %v624 = vmul.f32 %v508, %v508
        %v625 = vmul.f32 %v556, %v556
        %v626 = vmul.f32 %v511, %v511
        %v627 = vmul.f32 %v559, %v559
        %v628 = vmul.f32 %v513, %v513
        %v629 = vmul.f32 %v561, %v561
        %v630 = vmul.f32 %v516, %v516
        %v631 = vmul.f32 %v564, %v564
        %v632 = vmul.f32 %v518, %v518
        %v633 = vmul.f32 %v566, %v566
        %v634 = vmul.f32 %v521, %v521
        %v635 = vmul.f32 %v569, %v569
        %v636 = vmul.f32 %v523, %v523
        %v637 = vmul.f32 %v571, %v571
        %v638 = vmul.f32 %v526, %v526
        %v639 = vmul.f32 %v574, %v574
        %v640 = vmul.f32 %v528, %v528
        %v641 = vmul.f32 %v576, %v576
        %v642 = vmul.f32 %v531, %v531
        %v643 = vmul.f32 %v579, %v579
        %v644 = vmul.f32 %v533, %v533
        %v645 = vmul.f32 %v581, %v581
        %v646 = vmul.f32 %v536, %v536
        %v647 = vmul.f32 %v584, %v584
        %v648 = vmul.f32 %v538, %v538
        %v649 = vmul.f32 %v586, %v586
        %v650 = vmul.f32 %v541, %v541
        %v651 = vmul.f32 %v589, %v589
        %v652 = vmul.f32 %v622, %v506
        %v653 = vmul.f32 %v623, %v554
        %v654 = vmul.f32 %v624, %v508
        %v655 = vmul.f32 %v625, %v556
        %v656 = vmul.f32 %v626, %v511
        %v657 = vmul.f32 %v627, %v559
        %v658 = vmul.f32 %v628, %v513
        %v659 = vmul.f32 %v629, %v561
        %v660 = vmul.f32 %v630, %v516
        %v661 = vmul.f32 %v631, %v564
        %v662 = vmul.f32 %v632, %v518
        %v663 = vmul.f32 %v633, %v566
        %v664 = vmul.f32 %v634, %v521
        %v665 = vmul.f32 %v635, %v569
        %v666 = vmul.f32 %v636, %v523
        %v667 = vmul.f32 %v637, %v571
        %v668 = vmul.f32 %v638, %v526
        %v669 = vmul.f32 %v639, %v574
        %v670 = vmul.f32 %v640, %v528
        %v671 = vmul.f32 %v641, %v576
        %v672 = vmul.f32 %v642, %v531
        %v673 = vmul.f32 %v643, %v579
        %v674 = vmul.f32 %v644, %v533
        %v675 = vmul.f32 %v645, %v581
        %v676 = vmul.f32 %v646, %v536
        %v677 = vmul.f32 %v647, %v584
        %v678 = vmul.f32 %v648, %v538
        %v679 = vmul.f32 %v649, %v586
        %v680 = vmul.f32 %v650, %v541
        %v681 = vmul.f32 %v651, %v589
        %v682 = vmul.f32 %v652, 0.044715
        %v683 = vmul.f32 %v653, 0.044715
        %v684 = vmul.f32 %v654, 0.044715
        %v685 = vmul.f32 %v655, 0.044715
        %v686 = vmul.f32 %v656, 0.044715
        %v687 = vmul.f32 %v657, 0.044715
        %v688 = vmul.f32 %v658, 0.044715
        %v689 = vmul.f32 %v659, 0.044715
        %v690 = vmul.f32 %v660, 0.044715
        %v691 = vmul.f32 %v661, 0.044715
        %v692 = vmul.f32 %v662, 0.044715
        %v693 = vmul.f32 %v663, 0.044715
        %v694 = vmul.f32 %v664, 0.044715
        %v695 = vmul.f32 %v665, 0.044715
        %v696 = vmul.f32 %v666, 0.044715
        %v697 = vmul.f32 %v667, 0.044715
        %v698 = vmul.f32 %v668, 0.044715
        %v699 = vmul.f32 %v669, 0.044715
        %v700 = vmul.f32 %v670, 0.044715
        %v701 = vmul.f32 %v671, 0.044715
        %v702 = vmul.f32 %v672, 0.044715
        %v703 = vmul.f32 %v673, 0.044715
        %v704 = vmul.f32 %v674, 0.044715
        %v705 = vmul.f32 %v675, 0.044715
        %v706 = vmul.f32 %v676, 0.044715
        %v707 = vmul.f32 %v677, 0.044715
        %v708 = vmul.f32 %v678, 0.044715
        %v709 = vmul.f32 %v679, 0.044715
        %v710 = vmul.f32 %v680, 0.044715
        %v711 = vmul.f32 %v681, 0.044715
        %v712 = vadd.f32 %v506, %v682
        %v713 = vadd.f32 %v554, %v683
        %v714 = vadd.f32 %v508, %v684
        %v715 = vadd.f32 %v556, %v685
        %v716 = vadd.f32 %v511, %v686
        %v717 = vadd.f32 %v559, %v687
        %v718 = vadd.f32 %v513, %v688
        %v719 = vadd.f32 %v561, %v689
        %v720 = vadd.f32 %v516, %v690
        %v721 = vadd.f32 %v564, %v691
        %v722 = vadd.f32 %v518, %v692
        %v723 = vadd.f32 %v566, %v693
        %v724 = vadd.f32 %v521, %v694
        %v725 = vadd.f32 %v569, %v695
        %v726 = vadd.f32 %v523, %v696
        %v727 = vadd.f32 %v571, %v697
        %v728 = vadd.f32 %v526, %v698
        %v729 = vadd.f32 %v574, %v699
        %v730 = vadd.f32 %v528, %v700
        %v731 = vadd.f32 %v576, %v701
        %v732 = vadd.f32 %v531, %v702
        %v733 = vadd.f32 %v579, %v703
        %v734 = vadd.f32 %v533, %v704
        %v735 = vadd.f32 %v581, %v705
        %v736 = vadd.f32 %v536, %v706
        %v737 = vadd.f32 %v584, %v707
        %v738 = vadd.f32 %v538, %v708
        %v739 = vadd.f32 %v586, %v709
        %v740 = vadd.f32 %v541, %v710
        %v741 = vadd.f32 %v589, %v711
        %v742 = vmul.f32 %v712, 0.7978846
        %v743 = vmul.f32 %v713, 0.7978846
        %v744 = vmul.f32 %v714, 0.7978846
        %v745 = vmul.f32 %v715, 0.7978846
        %v746 = vmul.f32 %v716, 0.7978846
        %v747 = vmul.f32 %v717, 0.7978846
        %v748 = vmul.f32 %v718, 0.7978846
        %v749 = vmul.f32 %v719, 0.7978846
        %v750 = vmul.f32 %v720, 0.7978846
        %v751 = vmul.f32 %v721, 0.7978846
        %v752 = vmul.f32 %v722, 0.7978846
        %v753 = vmul.f32 %v723, 0.7978846
        %v754 = vmul.f32 %v724, 0.7978846
        %v755 = vmul.f32 %v725, 0.7978846
        %v756 = vmul.f32 %v726, 0.7978846
        %v757 = vmul.f32 %v727, 0.7978846
        %v758 = vmul.f32 %v728, 0.7978846
        %v759 = vmul.f32 %v729, 0.7978846
        %v760 = vmul.f32 %v730, 0.7978846
        %v761 = vmul.f32 %v731, 0.7978846
        %v762 = vmul.f32 %v732, 0.7978846
        %v763 = vmul.f32 %v733, 0.7978846
        %v764 = vmul.f32 %v734, 0.7978846
        %v765 = vmul.f32 %v735, 0.7978846
        %v766 = vmul.f32 %v736, 0.7978846
        %v767 = vmul.f32 %v737, 0.7978846
        %v768 = vmul.f32 %v738, 0.7978846
        %v769 = vmul.f32 %v739, 0.7978846
        %v770 = vmul.f32 %v740, 0.7978846
        %v771 = vmul.f32 %v741, 0.7978846
        %v772 = vtanh.pop %v742
        %v773 = vtanh.pop %v743
        %v774 = vtanh.pop %v744
        %v775 = vtanh.pop %v745
        %v776 = vtanh.pop %v746
        %v777 = vtanh.pop %v747
        %v778 = vtanh.pop %v748
        %v779 = vtanh.pop %v749
        %v780 = vtanh.pop %v750
        %v781 = vtanh.pop %v751
        %v782 = vtanh.pop %v752
        %v783 = vtanh.pop %v753
        %v784 = vtanh.pop %v754
        %v785 = vtanh.pop %v755
        %v786 = vtanh.pop %v756
        %v787 = vtanh.pop %v757
        %v788 = vtanh.pop %v758
        %v789 = vtanh.pop %v759
        %v790 = vtanh.pop %v760
        %v791 = vtanh.pop %v761
        %v792 = vtanh.pop %v762
        %v793 = vtanh.pop %v763
        %v794 = vtanh.pop %v764
        %v795 = vtanh.pop %v765
        %v796 = vtanh.pop %v766
        %v797 = vtanh.pop %v767
        %v798 = vtanh.pop %v768
        %v799 = vtanh.pop %v769
        %v800 = vtanh.pop %v770
        %v801 = vtanh.pop %v771
        %v802 = vadd.f32 %v772, 1.0
        %v803 = vadd.f32 %v773, 1.0
        %v804 = vadd.f32 %v774, 1.0
        %v805 = vadd.f32 %v775, 1.0
        %v806 = vadd.f32 %v776, 1.0
        %v807 = vadd.f32 %v777, 1.0
        %v808 = vadd.f32 %v778, 1.0
        %v809 = vadd.f32 %v779, 1.0
        %v810 = vadd.f32 %v780, 1.0
        %v811 = vadd.f32 %v781, 1.0
        %v812 = vadd.f32 %v782, 1.0
        %v813 = vadd.f32 %v783, 1.0
        %v814 = vadd.f32 %v784, 1.0
        %v815 = vadd.f32 %v785, 1.0
        %v816 = vadd.f32 %v786, 1.0
        %v817 = vadd.f32 %v787, 1.0
        %v818 = vadd.f32 %v788, 1.0
        %v819 = vadd.f32 %v789, 1.0
        %v820 = vadd.f32 %v790, 1.0
        %v821 = vadd.f32 %v791, 1.0
        %v822 = vadd.f32 %v792, 1.0
        %v823 = vadd.f32 %v793, 1.0
        %v824 = vadd.f32 %v794, 1.0
        %v825 = vadd.f32 %v795, 1.0
        %v826 = vadd.f32 %v796, 1.0
        %v827 = vadd.f32 %v797, 1.0
        %v828 = vadd.f32 %v798, 1.0
        %v829 = vadd.f32 %v799, 1.0
        %v830 = vadd.f32 %v800, 1.0
        %v831 = vadd.f32 %v801, 1.0
        %v832 = vmul.f32 %v592, %v802
        %v833 = vmul.f32 %v593, %v803
        %v834 = vmul.f32 %v594, %v804
        %v835 = vmul.f32 %v595, %v805
        %v836 = vmul.f32 %v596, %v806
        %v837 = vmul.f32 %v597, %v807
        %v838 = vmul.f32 %v598, %v808
        %v839 = vmul.f32 %v599, %v809
        %v840 = vmul.f32 %v600, %v810
        %v841 = vmul.f32 %v601, %v811
        %v842 = vmul.f32 %v602, %v812
        %v843 = vmul.f32 %v603, %v813
        %v844 = vmul.f32 %v604, %v814
        %v845 = vmul.f32 %v605, %v815
        %v846 = vmul.f32 %v606, %v816
        %v847 = vmul.f32 %v607, %v817
        %v848 = vmul.f32 %v608, %v818
        %v849 = vmul.f32 %v609, %v819
        %v850 = vmul.f32 %v610, %v820
        %v851 = vmul.f32 %v611, %v821
        %v852 = vmul.f32 %v612, %v822
        %v853 = vmul.f32 %v613, %v823
        %v854 = vmul.f32 %v614, %v824
        %v855 = vmul.f32 %v615, %v825
        %v856 = vmul.f32 %v616, %v826
        %v857 = vmul.f32 %v617, %v827
        %v858 = vmul.f32 %v618, %v828
        %v859 = vmul.f32 %v619, %v829
        %v860 = vmul.f32 %v620, %v830
        %v861 = vmul.f32 %v621, %v831
        %v862 = vpack.c.bf16 %v834, %v832
        %v863 = vpack.c.bf16 %v835, %v833
        %v864 = vpack.c.bf16 %v838, %v836
        %v865 = vpack.c.bf16 %v839, %v837
        %v866 = vpack.c.bf16 %v842, %v840
        %v867 = vpack.c.bf16 %v843, %v841
        %v868 = vpack.c.bf16 %v846, %v844
        %v869 = vpack.c.bf16 %v847, %v845
        %v870 = vpack.c.bf16 %v850, %v848
        %v871 = vpack.c.bf16 %v851, %v849
        %v872 = vpack.c.bf16 %v854, %v852
        %v873 = vpack.c.bf16 %v855, %v853
        %v874 = vpack.c.bf16 %v858, %v856
        %v875 = vpack.c.bf16 %v859, %v857
        %v876 = vpack.c.bf16 %v860, %v860
        %v877 = vpack.c.bf16 %v861, %v861
        %v878 = vld [vmem:[#allocation10] sm:$0xff]
        %v879 = vld [vmem:[#allocation10 + $0x8] sm:$0xff]
        %v880 = vld [vmem:[#allocation10 + $0x10] sm:$0xff]
        %v881 = vld [vmem:[#allocation10 + $0x18] sm:$0xff]
        %v882 = vld [vmem:[#allocation10 + $0x20] sm:$0xff]
        %v883 = vld [vmem:[#allocation10 + $0x28] sm:$0xff]
        %v884 = vld [vmem:[#allocation10 + $0x30] sm:$0xff]
        %v885 = vld [vmem:[#allocation10 + $0x38] sm:$0xff]
        %v886 = vld [vmem:[#allocation10 + $0x40] sm:$0xff]
        %v887 = vld [vmem:[#allocation10 + $0x48] sm:$0xff]
        %v888 = vld [vmem:[#allocation10 + $0x50] sm:$0xff]
        %v889 = vld [vmem:[#allocation10 + $0x58] sm:$0xff]
        %v890 = vld [vmem:[#allocation10 + $0x60] sm:$0xff]
        %v891 = vld [vmem:[#allocation10 + $0x68] sm:$0xff]
        %v892 = vld [vmem:[#allocation10 + $0x70] sm:$0xff]
        %v893 = vld [vmem:[#allocation10 + $0x78] sm:$0xff]
        %v894 = vld [vmem:[#allocation10 + $0x80] sm:$0xff]
        %v895 = vld [vmem:[#allocation10 + $0x88] sm:$0xff]
        %v896 = vld [vmem:[#allocation10 + $0x90] sm:$0xff]
        %v897 = vld [vmem:[#allocation10 + $0x98] sm:$0xff]
        %v898 = vld [vmem:[#allocation10 + $0xa0] sm:$0xff]
        %v899 = vld [vmem:[#allocation10 + $0xa8] sm:$0xff]
        %v900 = vld [vmem:[#allocation10 + $0xb0] sm:$0xff]
        %v901 = vld [vmem:[#allocation10 + $0xb8] sm:$0xff]
        %v902 = vld [vmem:[#allocation10 + $0xc0] sm:$0xff]
        %v903 = vld [vmem:[#allocation10 + $0xc8] sm:$0xff]
        %v904 = vld [vmem:[#allocation10 + $0xd0] sm:$0xff]
        %v905 = vld [vmem:[#allocation10 + $0xd8] sm:$0xff]
        %v906 = vld [vmem:[#allocation10 + $0xe0] sm:$0xff]
        %v907 = vld [vmem:[#allocation10 + $0xe8] sm:$0xff]
        %v908 = vld [vmem:[#allocation10 + $0xf0] sm:$0xff]
        %v909 = vld [vmem:[#allocation10 + $0xf8] sm:$0xff]
        %v942 = vunpack.c.l.b16 %v878
        %v943 = vunpack.c.h.b16 %v878
        %v944 = vunpack.c.l.b16 %v879
        %v945 = vunpack.c.h.b16 %v879
        %v946 = vunpack.c.l.b16 %v880
        %v947 = vunpack.c.h.b16 %v880
        %v948 = vunpack.c.l.b16 %v881
        %v949 = vunpack.c.h.b16 %v881
        %v950 = vunpack.c.l.b16 %v882
        %v951 = vunpack.c.h.b16 %v882
        %v952 = vunpack.c.l.b16 %v883
        %v953 = vunpack.c.h.b16 %v883
        %v954 = vunpack.c.l.b16 %v884
        %v955 = vunpack.c.h.b16 %v884
        %v956 = vunpack.c.l.b16 %v885
        %v957 = vunpack.c.h.b16 %v885
        %v958 = vunpack.c.l.b16 %v886
        %v959 = vunpack.c.h.b16 %v886
        %v960 = vunpack.c.l.b16 %v887
        %v961 = vunpack.c.h.b16 %v887
        %v962 = vunpack.c.l.b16 %v888
        %v963 = vunpack.c.h.b16 %v888
        %v964 = vunpack.c.l.b16 %v889
        %v965 = vunpack.c.h.b16 %v889
        %v966 = vunpack.c.l.b16 %v890
        %v967 = vunpack.c.h.b16 %v890
        %v968 = vunpack.c.l.b16 %v891
        %v969 = vunpack.c.h.b16 %v891
        %v970 = vunpack.c.l.b16 %v892
        %v971 = vunpack.c.h.b16 %v892
        %v972 = vunpack.c.l.b16 %v893
        %v973 = vunpack.c.h.b16 %v893
        %v974 = vunpack.c.l.b16 %v894
        %v975 = vunpack.c.h.b16 %v894
        %v976 = vunpack.c.l.b16 %v895
        %v977 = vunpack.c.h.b16 %v895
        %v978 = vunpack.c.l.b16 %v896
        %v979 = vunpack.c.h.b16 %v896
        %v980 = vunpack.c.l.b16 %v897
        %v981 = vunpack.c.h.b16 %v897
        %v982 = vunpack.c.l.b16 %v898
        %v983 = vunpack.c.h.b16 %v898
        %v984 = vunpack.c.l.b16 %v899
        %v985 = vunpack.c.h.b16 %v899
        %v986 = vunpack.c.l.b16 %v900
        %v987 = vunpack.c.h.b16 %v900
        %v988 = vunpack.c.l.b16 %v901
        %v989 = vunpack.c.h.b16 %v901
        %v990 = vunpack.c.l.b16 %v902
        %v991 = vunpack.c.h.b16 %v902
        %v992 = vunpack.c.l.b16 %v903
        %v993 = vunpack.c.h.b16 %v903
        %v994 = vunpack.c.l.b16 %v904
        %v995 = vunpack.c.h.b16 %v904
        %v996 = vunpack.c.l.b16 %v905
        %v997 = vunpack.c.h.b16 %v905
        %v998 = vunpack.c.l.b16 %v906
        %v999 = vunpack.c.h.b16 %v906
        %v1000 = vunpack.c.l.b16 %v907
        %v1001 = vunpack.c.h.b16 %v907
        %v1002 = vunpack.c.l.b16 %v908
        %v1003 = vunpack.c.h.b16 %v908
        %v1004 = vunpack.c.l.b16 %v909
        %v1005 = vunpack.c.h.b16 %v909
        %v1006 = vpack.c.b16 %v944, %v942
        %v1007 = vpack.c.b16 %v945, %v943
        %v1008 = vpack.c.b16 %v948, %v946
        %v1009 = vpack.c.b16 %v949, %v947
        %v1010 = vpack.c.b16 %v952, %v950
        %v1011 = vpack.c.b16 %v953, %v951
        %v1012 = vpack.c.b16 %v956, %v954
        %v1013 = vpack.c.b16 %v957, %v955
        %v1014 = vpack.c.b16 %v960, %v958
        %v1015 = vpack.c.b16 %v961, %v959
        %v1016 = vpack.c.b16 %v964, %v962
        %v1017 = vpack.c.b16 %v965, %v963
        %v1018 = vpack.c.b16 %v968, %v966
        %v1019 = vpack.c.b16 %v969, %v967
        %v1020 = vpack.c.b16 %v972, %v970
        %v1021 = vpack.c.b16 %v973, %v971
        %v1022 = vpack.c.b16 %v976, %v974
        %v1023 = vpack.c.b16 %v977, %v975
        %v1024 = vpack.c.b16 %v980, %v978
        %v1025 = vpack.c.b16 %v981, %v979
        %v1026 = vpack.c.b16 %v984, %v982
        %v1027 = vpack.c.b16 %v985, %v983
        %v1028 = vpack.c.b16 %v988, %v986
        %v1029 = vpack.c.b16 %v989, %v987
        %v1030 = vpack.c.b16 %v992, %v990
        %v1031 = vpack.c.b16 %v993, %v991
        %v1032 = vpack.c.b16 %v996, %v994
        %v1033 = vpack.c.b16 %v997, %v995
        %v1034 = vpack.c.b16 %v1000, %v998
        %v1035 = vpack.c.b16 %v1001, %v999
        %v1036 = vpack.c.b16 %v1004, %v1002
        %v1037 = vpack.c.b16 %v1005, %v1003
        %1070 = vmatpush.bf16.msra.mxu0 %v1020
        %1071 = vmatpush.bf16.msra.mxu0 %v1018
        %1072 = vmatpush.bf16.msra.mxu0 %v1016
        %1073 = vmatpush.bf16.msra.mxu0 %v1014
        %1074 = vmatpush.bf16.msra.mxu0 %v1012
        %1075 = vmatpush.bf16.msra.mxu0 %v1010
        %1076 = vmatpush.bf16.msra.mxu0 %v1008
        %1077 = vmatpush.bf16.msra.mxu0 %v1006
        %1078 = vmatmul.bf16.gmra.mxu0 %v862
        %v1079 = vpop.f32.mrf.mxu0
        %v1080 = vadd.f32 0.0, %v1079
        %v1081 = vpop.f32.mrf.mxu0
        %v1082 = vadd.f32 0.0, %v1081
        %1083 = vmatmul.bf16.gmra.mxu0 %v864
        %v1084 = vpop.f32.mrf.mxu0
        %v1085 = vadd.f32 0.0, %v1084
        %v1086 = vpop.f32.mrf.mxu0
        %v1087 = vadd.f32 0.0, %v1086
        %1088 = vmatmul.bf16.gmra.mxu0 %v866
        %v1089 = vpop.f32.mrf.mxu0
        %v1090 = vadd.f32 0.0, %v1089
        %v1091 = vpop.f32.mrf.mxu0
        %v1092 = vadd.f32 0.0, %v1091
        %1093 = vmatmul.bf16.gmra.mxu0 %v868
        %v1094 = vpop.f32.mrf.mxu0
        %v1095 = vadd.f32 0.0, %v1094
        %v1096 = vpop.f32.mrf.mxu0
        %v1097 = vadd.f32 0.0, %v1096
        %1098 = vmatmul.bf16.gmra.mxu0 %v870
        %v1099 = vpop.f32.mrf.mxu0
        %v1100 = vadd.f32 0.0, %v1099
        %v1101 = vpop.f32.mrf.mxu0
        %v1102 = vadd.f32 0.0, %v1101
        %1103 = vmatmul.bf16.gmra.mxu0 %v872
        %v1104 = vpop.f32.mrf.mxu0
        %v1105 = vadd.f32 0.0, %v1104
        %v1106 = vpop.f32.mrf.mxu0
        %v1107 = vadd.f32 0.0, %v1106
        %1108 = vmatmul.bf16.gmra.mxu0 %v874
        %v1109 = vpop.f32.mrf.mxu0
        %v1110 = vadd.f32 0.0, %v1109
        %v1111 = vpop.f32.mrf.mxu0
        %v1112 = vadd.f32 0.0, %v1111
        %1113 = vmatmul.bf16.gmra.mxu0 %v876
        %v1114 = vpop.f32.mrf.mxu0
        %v1115 = vadd.f32 0.0, %v1114
        %v1116 = vpop.f32.mrf.mxu0
        %1117 = vdwg.mxu0
        %1118 = vmatpush.bf16.msra.mxu0 %v1036
        %1119 = vmatpush.bf16.msra.mxu0 %v1034
        %1120 = vmatpush.bf16.msra.mxu0 %v1032
        %1121 = vmatpush.bf16.msra.mxu0 %v1030
        %1122 = vmatpush.bf16.msra.mxu0 %v1028
        %1123 = vmatpush.bf16.msra.mxu0 %v1026
        %1124 = vmatpush.bf16.msra.mxu0 %v1024
        %1125 = vmatpush.bf16.msra.mxu0 %v1022
        %1126 = vmatmul.bf16.gmra.mxu0 %v863
        %v1127 = vpop.f32.mrf.mxu0
        %v1128 = vadd.f32 %v1080, %v1127
        %v1129 = vpop.f32.mrf.mxu0
        %v1130 = vadd.f32 %v1082, %v1129
        %1131 = vmatmul.bf16.gmra.mxu0 %v865
        %v1132 = vpop.f32.mrf.mxu0
        %v1133 = vadd.f32 %v1085, %v1132
        %v1134 = vpop.f32.mrf.mxu0
        %v1135 = vadd.f32 %v1087, %v1134
        %1136 = vmatmul.bf16.gmra.mxu0 %v867
        %v1137 = vpop.f32.mrf.mxu0
        %v1138 = vadd.f32 %v1090, %v1137
        %v1139 = vpop.f32.mrf.mxu0
        %v1140 = vadd.f32 %v1092, %v1139
        %1141 = vmatmul.bf16.gmra.mxu0 %v869
        %v1142 = vpop.f32.mrf.mxu0
        %v1143 = vadd.f32 %v1095, %v1142
        %v1144 = vpop.f32.mrf.mxu0
        %v1145 = vadd.f32 %v1097, %v1144
        %1146 = vmatmul.bf16.gmra.mxu0 %v871
        %v1147 = vpop.f32.mrf.mxu0
        %v1148 = vadd.f32 %v1100, %v1147
        %v1149 = vpop.f32.mrf.mxu0
        %v1150 = vadd.f32 %v1102, %v1149
        %1151 = vmatmul.bf16.gmra.mxu0 %v873
        %v1152 = vpop.f32.mrf.mxu0
        %v1153 = vadd.f32 %v1105, %v1152
        %v1154 = vpop.f32.mrf.mxu0
        %v1155 = vadd.f32 %v1107, %v1154
        %1156 = vmatmul.bf16.gmra.mxu0 %v875
        %v1157 = vpop.f32.mrf.mxu0
        %v1158 = vadd.f32 %v1110, %v1157
        %v1159 = vpop.f32.mrf.mxu0
        %v1160 = vadd.f32 %v1112, %v1159
        %1161 = vmatmul.bf16.gmra.mxu0 %v877
        %v1162 = vpop.f32.mrf.mxu0
        %v1163 = vadd.f32 %v1115, %v1162
        %v1164 = vpop.f32.mrf.mxu0
        %1165 = vdwg.mxu0
        %1166 = vmatpush.bf16.msra.mxu0 %v1021
        %1167 = vmatpush.bf16.msra.mxu0 %v1019
        %1168 = vmatpush.bf16.msra.mxu0 %v1017
        %1169 = vmatpush.bf16.msra.mxu0 %v1015
        %1170 = vmatpush.bf16.msra.mxu0 %v1013
        %1171 = vmatpush.bf16.msra.mxu0 %v1011
        %1172 = vmatpush.bf16.msra.mxu0 %v1009
        %1173 = vmatpush.bf16.msra.mxu0 %v1007
        %1174 = vmatmul.bf16.gmra.mxu0 %v862
        %v1175 = vpop.f32.mrf.mxu0
        %v1176 = vadd.f32 0.0, %v1175
        %v1177 = vpop.f32.mrf.mxu0
        %v1178 = vadd.f32 0.0, %v1177
        %1179 = vmatmul.bf16.gmra.mxu0 %v864
        %v1180 = vpop.f32.mrf.mxu0
        %v1181 = vadd.f32 0.0, %v1180
        %v1182 = vpop.f32.mrf.mxu0
        %v1183 = vadd.f32 0.0, %v1182
        %1184 = vmatmul.bf16.gmra.mxu0 %v866
        %v1185 = vpop.f32.mrf.mxu0
        %v1186 = vadd.f32 0.0, %v1185
        %v1187 = vpop.f32.mrf.mxu0
        %v1188 = vadd.f32 0.0, %v1187
        %1189 = vmatmul.bf16.gmra.mxu0 %v868
        %v1190 = vpop.f32.mrf.mxu0
        %v1191 = vadd.f32 0.0, %v1190
        %v1192 = vpop.f32.mrf.mxu0
        %v1193 = vadd.f32 0.0, %v1192
        %1194 = vmatmul.bf16.gmra.mxu0 %v870
        %v1195 = vpop.f32.mrf.mxu0
        %v1196 = vadd.f32 0.0, %v1195
        %v1197 = vpop.f32.mrf.mxu0
        %v1198 = vadd.f32 0.0, %v1197
        %1199 = vmatmul.bf16.gmra.mxu0 %v872
        %v1200 = vpop.f32.mrf.mxu0
        %v1201 = vadd.f32 0.0, %v1200
        %v1202 = vpop.f32.mrf.mxu0
        %v1203 = vadd.f32 0.0, %v1202
        %1204 = vmatmul.bf16.gmra.mxu0 %v874
        %v1205 = vpop.f32.mrf.mxu0
        %v1206 = vadd.f32 0.0, %v1205
        %v1207 = vpop.f32.mrf.mxu0
        %v1208 = vadd.f32 0.0, %v1207
        %1209 = vmatmul.bf16.gmra.mxu0 %v876
        %v1210 = vpop.f32.mrf.mxu0
        %v1211 = vadd.f32 0.0, %v1210
        %v1212 = vpop.f32.mrf.mxu0
        %1213 = vdwg.mxu0
        %1214 = vmatpush.bf16.msra.mxu0 %v1037
        %1215 = vmatpush.bf16.msra.mxu0 %v1035
        %1216 = vmatpush.bf16.msra.mxu0 %v1033
        %1217 = vmatpush.bf16.msra.mxu0 %v1031
        %1218 = vmatpush.bf16.msra.mxu0 %v1029
        %1219 = vmatpush.bf16.msra.mxu0 %v1027
        %1220 = vmatpush.bf16.msra.mxu0 %v1025
        %1221 = vmatpush.bf16.msra.mxu0 %v1023
        %1222 = vmatmul.bf16.gmra.mxu0 %v863
        %v1223 = vpop.f32.mrf.mxu0
        %v1224 = vadd.f32 %v1176, %v1223
        %v1225 = vpop.f32.mrf.mxu0
        %v1226 = vadd.f32 %v1178, %v1225
        %1227 = vmatmul.bf16.gmra.mxu0 %v865
        %v1228 = vpop.f32.mrf.mxu0
        %v1229 = vadd.f32 %v1181, %v1228
        %v1230 = vpop.f32.mrf.mxu0
        %v1231 = vadd.f32 %v1183, %v1230
        %1232 = vmatmul.bf16.gmra.mxu0 %v867
        %v1233 = vpop.f32.mrf.mxu0
        %v1234 = vadd.f32 %v1186, %v1233
        %v1235 = vpop.f32.mrf.mxu0
        %v1236 = vadd.f32 %v1188, %v1235
        %1237 = vmatmul.bf16.gmra.mxu0 %v869
        %v1238 = vpop.f32.mrf.mxu0
        %v1239 = vadd.f32 %v1191, %v1238
        %v1240 = vpop.f32.mrf.mxu0
        %v1241 = vadd.f32 %v1193, %v1240
        %1242 = vmatmul.bf16.gmra.mxu0 %v871
        %v1243 = vpop.f32.mrf.mxu0
        %v1244 = vadd.f32 %v1196, %v1243
        %v1245 = vpop.f32.mrf.mxu0
        %v1246 = vadd.f32 %v1198, %v1245
        %1247 = vmatmul.bf16.gmra.mxu0 %v873
        %v1248 = vpop.f32.mrf.mxu0
        %v1249 = vadd.f32 %v1201, %v1248
        %v1250 = vpop.f32.mrf.mxu0
        %v1251 = vadd.f32 %v1203, %v1250
        %1252 = vmatmul.bf16.gmra.mxu0 %v875
        %v1253 = vpop.f32.mrf.mxu0
        %v1254 = vadd.f32 %v1206, %v1253
        %v1255 = vpop.f32.mrf.mxu0
        %v1256 = vadd.f32 %v1208, %v1255
        %1257 = vmatmul.bf16.gmra.mxu0 %v877
        %v1258 = vpop.f32.mrf.mxu0
        %v1259 = vadd.f32 %v1211, %v1258
        %v1260 = vpop.f32.mrf.mxu0
        %1261 = vdwg.mxu0
        %v1262 = vpack.c.bf16 %v1224, %v1128
        %v1263 = vpack.c.bf16 %v1226, %v1130
        %v1264 = vpack.c.bf16 %v1229, %v1133
        %v1265 = vpack.c.bf16 %v1231, %v1135
        %v1266 = vpack.c.bf16 %v1234, %v1138
        %v1267 = vpack.c.bf16 %v1236, %v1140
        %v1268 = vpack.c.bf16 %v1239, %v1143
        %v1269 = vpack.c.bf16 %v1241, %v1145
        %v1270 = vpack.c.bf16 %v1244, %v1148
        %v1271 = vpack.c.bf16 %v1246, %v1150
        %v1272 = vpack.c.bf16 %v1249, %v1153
        %v1273 = vpack.c.bf16 %v1251, %v1155
        %v1274 = vpack.c.bf16 %v1254, %v1158
        %v1275 = vpack.c.bf16 %v1256, %v1160
        %v1276 = vpack.c.bf16 %v1259, %v1163
        %1277 = vst [vmem:[%s302] sm:$0xff] %v1262
        %1278 = vst [vmem:[%s302 + $0x8] sm:$0xff] %v1263
        %1279 = vst [vmem:[%s302 + $0x10] sm:$0xff] %v1264
        %1280 = vst [vmem:[%s302 + $0x18] sm:$0xff] %v1265
        %1281 = vst [vmem:[%s302 + $0x20] sm:$0xff] %v1266
        %1282 = vst [vmem:[%s302 + $0x28] sm:$0xff] %v1267
        %1283 = vst [vmem:[%s302 + $0x30] sm:$0xff] %v1268
        %1284 = vst [vmem:[%s302 + $0x38] sm:$0xff] %v1269
        %1285 = vst [vmem:[%s302 + $0x40] sm:$0xff] %v1270
        %1286 = vst [vmem:[%s302 + $0x48] sm:$0xff] %v1271
        %1287 = vst [vmem:[%s302 + $0x50] sm:$0xff] %v1272
        %1288 = vst [vmem:[%s302 + $0x58] sm:$0xff] %v1273
        %1289 = vst [vmem:[%s302 + $0x60] sm:$0xff] %v1274
        %1290 = vst [vmem:[%s302 + $0x68] sm:$0xff] %v1275
        %1291 = vst [vmem:[%s302 + $0x70] sm:$0xff] %v1276
        %s1292 = sand.u32 %s150, 1
        %s1293 = scalar_lea.sflag [#allocation6], %s1292
        %s1294 = sand.u32 %s150, 1
        %s1295 = smul.addr %s1294, 120
        %s1296 = scalar_lea.vmem [#allocation12], %s1295
        // Predicated region
        $region53: #{tpu_custom_call.1} parent=35 // pred_check
          %p1297 = pneg %p160
        $region54: #{tpu_custom_call.1} parent=35 // pred_check_branch
          %1299 = sbr.rel (%p1297) target = $region56
        $region55: #{tpu_custom_call.1} parent=35 // pred_region
          %s1300 = smul.u32 15, %s37
          %1302 = vsyncadd %s1293, 0
          %s1303 = smul.addr %s1300, 2
          %s1304 = smul.addr %s36, 30
          %s1305 = sadd.s32 %s1303, %s1304
          %s1306 = smul.addr %s1305, 4
          %s1307 = scalar_lea.hbm %s5, %s1306
          %s1308 = sshll.u32 %s1296, 4
          %s1309 = int_to_ptr.vmem [resolvable:$true] %s1308
          %s1310 = sshll.u32 %s1307, 4
          %s1311 = int_to_ptr.hbm [resolvable:$true] %s1310
          %1316 = dma.vmem_to_hbm [thread:$0]  %s1309, 1920, %s1311, %s1293, 128, 128, 8
        $region56: #{tpu_custom_call.1} parent=35 // pred_fallthru
          _
      $region36: #{tpu_custom_call.1} parent=5 // pred_fallthru
        _
      %p1317 = scmp.le.s32.totalorder 2, %s27
      // Predicated region
      $region57: #{tpu_custom_call.1} parent=5 // pred_check
        %p1318 = pneg %p1317
      $region58: #{tpu_custom_call.1} parent=5 // pred_check_branch
        %1320 = sbr.rel (%p1318) target = $region60
      $region59: #{tpu_custom_call.1} parent=5 // pred_region
        %s1321 = ssub.s32 %s27, 2
        // Predicated region
        $region61: #{tpu_custom_call.1} parent=59 // pred_check
          %p1322 = pneg %p166
        $region62: #{tpu_custom_call.1} parent=59 // pred_check_branch
          %1324 = sbr.rel (%p1322) target = $region64
        $region63: #{tpu_custom_call.1} parent=59 // pred_region
          %s1325 = sand.u32 %s151, 1
          %s1326 = scalar_lea.sflag [#allocation6], %s1325
          %s1327 = sand.u32 %s151, 1
          %s1328 = smul.addr %s1327, 120
          %s1329 = scalar_lea.vmem [#allocation12], %s1328
          %1331 = dma.done %s1326, 1920
        $region64: #{tpu_custom_call.1} parent=59 // pred_fallthru
          _
      $region60: #{tpu_custom_call.1} parent=5 // pred_fallthru
        _
    $region6: #{tpu_custom_call.1} parent=1 // loop_footer
      %s31 = sadd.s32 1, %s27
    $region7: #{tpu_custom_call.1} parent=1 // loop_footer_branch
      %26 = sbr.rel target = $region3
    $region8: #{tpu_custom_call.1} parent=1 // loop_exit
      _
    %1332 = vsyncpa [#allocation5], 1
    %s1333 = scalar_lea.sflag [#allocation5], 1
    %1334 = vsyncpa %s1333, 1
    %1335 = vsyncpa [#allocation8], 1
    %1336 = vsyncpa [#allocation11], 1
    %1337 = vsyncpa [#allocation6], 1
    %s1338 = scalar_lea.sflag [#allocation6], 1
    %1339 = vsyncpa %s1338, 1

</llo_original>
